<compile_context>
chip_gen: v5e
topology: v5e:2x2
jax: 0.10.0
libtpu: 0.0.40
codegen_flags: <defaults>
</compile_context>

<pallas_src>
import math
from functools import partial

import jax
import jax.numpy as jnp
from jax.experimental import pallas as pl
from jax.experimental.pallas import tpu as pltpu


# ---------------------------------------------------------------------------
# helpers
# ---------------------------------------------------------------------------
def _layer_norm(x, gamma, beta, eps=1e-5):
    mean = jnp.mean(x, axis=-1, keepdims=True)
    var = jnp.mean((x - mean) ** 2, axis=-1, keepdims=True)
    return (x - mean) * jax.lax.rsqrt(var + eps) * gamma + beta


def _divisor_tile(n, preferred, quantum):
    """Largest tile <= preferred that divides n and is a multiple of `quantum`
    (falls back to n itself, which is always a legal full-extent block)."""
    if n <= preferred:
        return n
    t = (preferred // quantum) * quantum
    while t >= quantum:
        if n % t == 0:
            return t
        t -= quantum
    return n


def _chip_config():
    """Per-generation VMEM budget and row-tile targets (review items for v5e/v6e/v7x)."""
    kind = ""
    try:
        kind = jax.devices()[0].device_kind.lower()
    except Exception:
        pass
    if "v5" in kind or "v6" in kind:
        # 128 MiB physical VMEM: big tiles amortize the per-layer weight stream.
        return dict(vmem=100 * 1024 * 1024, enc_rows=1024, dec_rows=2048, split_grid=False)
    # v7x (64 MiB physical) and unknown chips: leave headroom, keep >= 2 batch tiles
    # so both TensorCores of a v7x chip get work on the "parallel" axis.
    return dict(vmem=48 * 1024 * 1024, enc_rows=512, dec_rows=1024, split_grid=True)


# ---------------------------------------------------------------------------
# Encoder kernel: one grid step == one (batch tile, encoder layer)
# ---------------------------------------------------------------------------
def encoder_layer_kernel(x_ref, pe_ref, mask_ref,
                         w_in_ref, w_out_ref, w1_ref, w2_ref, vec_ref,
                         out_ref, x_acc, *, nhead):
    layer = pl.program_id(1)
    TB, S, D = x_acc.shape
    d_hid = w1_ref.shape[2]
    hd = D // nhead
    N = TB * S
    bf16 = jnp.bfloat16

    # layer 0: src = emb*sqrt(d_model) + pe  (the sqrt(d_model) scale is pre-folded
    # into the embedding table on the host; dropout = identity in eval mode)
    @pl.when(layer == 0)
    def _():
        x_acc[...] = x_ref[...] + pe_ref[...]

    x2d = x_acc[...].reshape(N, D)                      # f32 residual stream
    mask_b = mask_ref[...][None, :, :]                  # (1, S, S), hoisted out of head loop

    vecs = vec_ref[0]                                   # (8, vec_dim) packed per-layer vectors
    b_in = vecs[0, :3 * D]                              # q-scale already folded in
    b_out = vecs[1, :D]
    ln1_g, ln1_b = vecs[2, :D], vecs[3, :D]
    b1 = vecs[4, :d_hid]
    b2 = vecs[5, :D]
    ln2_g, ln2_b = vecs[6, :D], vecs[7, :D]

    # ---- self attention (post-norm TransformerEncoderLayer) ------------------
    qkv = jnp.dot(x2d.astype(bf16), w_in_ref[0],
                  preferred_element_type=jnp.float32) + b_in      # (N, 3D) f32
    qkv_bf = qkv.astype(bf16)                          # single bf16 cast for q/k/v

    # TODO(synk): replace the static head loop with a single rank-4 batched einsum
    # ('bqhd,bkhd->bhqk') once Mosaic reliably lowers multi-batch-dim dot_general /
    # major<->sublane transposes on all target toolchains.
    # TODO(synk): add KV/flash tiling over key blocks for long sequence lengths.
    ctx_heads = []
    for h in range(nhead):                             # static loop, static lane slices
        qh = qkv_bf[:, h * hd:(h + 1) * hd].reshape(TB, S, hd)
        kh = qkv_bf[:, D + h * hd:D + (h + 1) * hd].reshape(TB, S, hd)
        vh = qkv_bf[:, 2 * D + h * hd:2 * D + (h + 1) * hd].reshape(TB, S, hd)
        s_h = jnp.einsum('bqd,bkd->bqk', qh, kh,
                         preferred_element_type=jnp.float32) + mask_b
        s_h = s_h - jnp.max(s_h, axis=-1, keepdims=True)
        p_h = jnp.exp(s_h)
        inv_l = pl.reciprocal(jnp.sum(p_h, axis=-1, keepdims=True), approx=True)
        ctx_h = jnp.einsum('bqk,bkd->bqd', p_h.astype(bf16), vh,
                           preferred_element_type=jnp.float32)
        ctx_heads.append((ctx_h * inv_l).astype(bf16))  # concat bf16 (half the traffic)
    ctx = jnp.concatenate(ctx_heads, axis=-1).reshape(N, D)        # (N, D) bf16

    attn_out = jnp.dot(ctx, w_out_ref[0],
                       preferred_element_type=jnp.float32) + b_out
    x2d = _layer_norm(x2d + attn_out, ln1_g, ln1_b)

    # ---- feed forward ---------------------------------------------------------
    # TODO(synk): add an inner K-grid / emit_pipeline over d_hid for very large FFN
    # widths on v7x (64 MiB VMEM), keeping the layer-streamed weight design valid.
    h_ff = jnp.maximum(jnp.dot(x2d.astype(bf16), w1_ref[0],
                               preferred_element_type=jnp.float32) + b1, 0.0)
    ff = jnp.dot(h_ff.astype(bf16), w2_ref[0],
                 preferred_element_type=jnp.float32) + b2
    x2d = _layer_norm(x2d + ff, ln2_g, ln2_b)

    x_new = x2d.reshape(TB, S, D)
    x_acc[...] = x_new                                  # carry residual to next layer

    @pl.when(layer == pl.num_programs(1) - 1)
    def _():
        out_ref[...] = x_new.astype(out_ref.dtype)      # bf16 writeback


# ---------------------------------------------------------------------------
# Decoder kernel: rows x vocab tiles, lane-dense output
# ---------------------------------------------------------------------------
def decoder_kernel(x_ref, w_ref, b_ref, out_ref):
    out_ref[...] = (jnp.dot(x_ref[...], w_ref[...],
                            preferred_element_type=jnp.float32) + b_ref[...])


# ---------------------------------------------------------------------------
# One-time parameter formatting (host side, OUTSIDE the jitted forward)
# ---------------------------------------------------------------------------
def prepare_params(params, *, nhead):
    """Pre-transpose + bf16-cast weights, fold scales, pack per-layer vectors and pad
    the decoder vocab.  Run once at parameter-load time; invariant across calls."""
    D = params['emb'].shape[1]
    hd = D // nhead
    L, d_hid = params['w1'].shape[0], params['w1'].shape[1]
    bf16 = jnp.bfloat16

    # fold 1/sqrt(hd) query scale into the Q rows of W_in / b_in
    q_scale = 1.0 / math.sqrt(hd)
    w_in = params['w_in'].at[:, :D, :].multiply(q_scale)            # (L, 3D, D)
    b_in = params['b_in'].at[:, :D].multiply(q_scale)               # (L, 3D)

    # pack the 8 small per-layer vectors into a single (L, 8, vec_dim) array -> 1 DMA/layer
    vec_dim = max(3 * D, d_hid, D)

    def pad_row(a):                                                  # (L, dim) -> (L, 1, vec_dim)
        return jnp.zeros((L, 1, vec_dim), jnp.float32).at[:, 0, :a.shape[1]].set(a)

    vecs = jnp.concatenate([
        pad_row(b_in), pad_row(params['b_out']),
        pad_row(params['ln1_g']), pad_row(params['ln1_b']),
        pad_row(params['b1']), pad_row(params['b2']),
        pad_row(params['ln2_g']), pad_row(params['ln2_b']),
    ], axis=1)

    ntoken = params['w_dec'].shape[0]
    v_pad = ((ntoken + 127) // 128) * 128

    return {
        'emb':   (params['emb'] * math.sqrt(D)).astype(jnp.float32),     # sqrt(d_model) folded
        'pe':    jnp.transpose(params['pe'], (1, 0, 2)).astype(jnp.float32),  # (1, max_len, D)
        'w_in':  jnp.swapaxes(w_in, 1, 2).astype(bf16),                  # (L, D, 3D)
        'w_out': jnp.swapaxes(params['w_out'], 1, 2).astype(bf16),       # (L, D, D)
        'w1':    jnp.swapaxes(params['w1'], 1, 2).astype(bf16),          # (L, D, d_hid)
        'w2':    jnp.swapaxes(params['w2'], 1, 2).astype(bf16),          # (L, d_hid, D)
        'vecs':  vecs,                                                   # (L, 8, vec_dim) f32
        'w_dec': jnp.zeros((D, v_pad), bf16).at[:, :ntoken].set(
            params['w_dec'].T.astype(bf16)),
        'b_dec': jnp.zeros((1, v_pad), jnp.float32).at[:, :ntoken].set(
            params['b_dec'].reshape(1, ntoken)),
    }


# ---------------------------------------------------------------------------
# Forward pass (jitted); consumes pre-formatted params
# ---------------------------------------------------------------------------
def transformer_forward(tokens, src_mask, prep, *, nhead, nlayers, d_model, ntoken):
    S, B = tokens.shape
    D = d_model
    assert D % nhead == 0
    d_hid = prep['w1'].shape[2]
    vec_dim = prep['vecs'].shape[2]
    v_pad = prep['w_dec'].shape[1]
    cfg = _chip_config()

    # Embedding lookup stays in XLA (gather); scale is pre-folded into the table.
    # TODO(synk): move the gather in-kernel (PrefetchScalarGridSpec + pl.Element row gather).
    x_emb = jnp.take(prep['emb'], tokens.T, axis=0)                 # (B, S, D) f32
    pe = prep['pe'][:, :S, :]                                       # (1, S, D), static slice

    # batch tile: as many rows as the per-chip row budget allows; on v7x keep >= 2 tiles
    tile_b = max(1, min(B, max(1, cfg['enc_rows'] // S)))
    if cfg['split_grid'] and B >= 2:
        tile_b = min(tile_b, max(1, B // 2))
    while B % tile_b:
        tile_b -= 1

    layer_w = lambda shape: pl.BlockSpec(shape, lambda b, l: (l, 0, 0))
    act_spec = pl.BlockSpec((tile_b, S, D), lambda b, l: (b, 0, 0))

    x_enc = pl.pallas_call(
        partial(encoder_layer_kernel, nhead=nhead),
        out_shape=jax.ShapeDtypeStruct((B, S, D), jnp.bfloat16),    # bf16 activation I/O
        grid_spec=pltpu.PrefetchScalarGridSpec(
            num_scalar_prefetch=0,
            grid=(B // tile_b, nlayers),
            in_specs=[
                act_spec,                                           # x_emb
                pl.BlockSpec((1, S, D), lambda b, l: (0, 0, 0)),    # pe
                pl.BlockSpec((S, S), lambda b, l: (0, 0)),          # mask
                layer_w((1, D, 3 * D)),                             # w_in
                layer_w((1, D, D)),                                 # w_out
                layer_w((1, D, d_hid)),                             # w1
                layer_w((1, d_hid, D)),                             # w2
                layer_w((1, 8, vec_dim)),                           # packed biases / LN params
            ],
            out_specs=act_spec,
            scratch_shapes=[pltpu.VMEM((tile_b, S, D), jnp.float32)],
        ),
        compiler_params=pltpu.CompilerParams(
            dimension_semantics=("parallel", "arbitrary"),
            vmem_limit_bytes=cfg['vmem']),
    )(x_emb, pe, src_mask,
      prep['w_in'], prep['w_out'], prep['w1'], prep['w2'], prep['vecs'])

    # ---- decoder: Linear(d_model, ntoken); vocab padded to lane-dense multiple of 128
    N = B * S
    tile_n = _divisor_tile(N, cfg['dec_rows'], 8)       # large row tiles -> fewer w_dec re-reads
    tile_v = _divisor_tile(v_pad, 1024, 128)

    logits_pad = pl.pallas_call(
        decoder_kernel,
        out_shape=jax.ShapeDtypeStruct((N, v_pad), jnp.float32),
        grid_spec=pltpu.PrefetchScalarGridSpec(
            num_scalar_prefetch=0,
            grid=(N // tile_n, v_pad // tile_v),
            in_specs=[
                pl.BlockSpec((tile_n, D), lambda i, j: (i, 0)),
                pl.BlockSpec((D, tile_v), lambda i, j: (0, j)),
                pl.BlockSpec((1, tile_v), lambda i, j: (0, j)),
            ],
            out_specs=pl.BlockSpec((tile_n, tile_v), lambda i, j: (i, j)),
        ),
        compiler_params=pltpu.CompilerParams(
            dimension_semantics=("parallel", "parallel"),
            vmem_limit_bytes=cfg['vmem']),
    )(x_enc.reshape(N, D), prep['w_dec'], prep['b_dec'])

    # (B*S, Vpad) -> (S, B, ntoken)   (PyTorch batch_first=False convention)
    return jnp.transpose(logits_pad[:, :ntoken].reshape(B, S, ntoken), (1, 0, 2))


# ---------------------------------------------------------------------------
# Deterministic parameter construction (matches module __init__ shapes)
# ---------------------------------------------------------------------------
def make_params(key, *, ntoken, d_model, nhead, d_hid, nlayers, max_len=5000):
    ks = jax.random.split(key, 8)
    initrange = 0.1

    position = jnp.arange(max_len, dtype=jnp.float32)[:, None]
    div_term = jnp.exp(jnp.arange(0, d_model, 2, dtype=jnp.float32)
                       * (-math.log(10000.0) / d_model))
    ang = position * div_term
    pe = jnp.zeros((max_len, 1, d_model), jnp.float32)
    pe = pe.at[:, 0, 0::2].set(jnp.sin(ang))
    pe = pe.at[:, 0, 1::2].set(jnp.cos(ang))

    return {
        'emb':   jax.random.uniform(ks[0], (ntoken, d_model), jnp.float32,
                                    -initrange, initrange),
        'pe':    pe,
        'w_in':  jax.random.normal(ks[1], (nlayers, 3 * d_model, d_model), jnp.float32) * 0.05,
        'b_in':  jnp.zeros((nlayers, 3 * d_model), jnp.float32),
        'w_out': jax.random.normal(ks[2], (nlayers, d_model, d_model), jnp.float32) * 0.05,
        'b_out': jnp.zeros((nlayers, d_model), jnp.float32),
        'ln1_g': jnp.ones((nlayers, d_model), jnp.float32),
        'ln1_b': jnp.zeros((nlayers, d_model), jnp.float32),
        'w1':    jax.random.normal(ks[3], (nlayers, d_hid, d_model), jnp.float32) * 0.05,
        'b1':    jnp.zeros((nlayers, d_hid), jnp.float32),
        'w2':    jax.random.normal(ks[4], (nlayers, d_model, d_hid), jnp.float32) * 0.05,
        'b2':    jnp.zeros((nlayers, d_model), jnp.float32),
        'ln2_g': jnp.ones((nlayers, d_model), jnp.float32),
        'ln2_b': jnp.zeros((nlayers, d_model), jnp.float32),
        'w_dec': jax.random.uniform(ks[5], (ntoken, d_model), jnp.float32,
                                    -initrange, initrange),
        'b_dec': jnp.zeros((1, ntoken), jnp.float32),
    }


# ---------------------------------------------------------------------------
# Pure-JAX f32 reference (PyTorch semantics) for a correctness sanity check
# ---------------------------------------------------------------------------
def reference_forward(tokens, src_mask, params, *, nhead, nlayers, d_model):
    S, B = tokens.shape
    D = d_model
    hd = D // nhead
    x = jnp.take(params['emb'], tokens, axis=0) * math.sqrt(d_model) + params['pe'][:S]
    for l in range(nlayers):
        x2d = x.reshape(S * B, D)
        qkv = x2d @ params['w_in'][l].T + params['b_in'][l]
        q = qkv[:, :D].reshape(S, B * nhead, hd) / math.sqrt(hd)
        k = qkv[:, D:2 * D].reshape(S, B * nhead, hd)
        v = qkv[:, 2 * D:].reshape(S, B * nhead, hd)
        s = jnp.einsum('snd,tnd->nst', q, k) + src_mask[None]
        a = jax.nn.softmax(s, axis=-1)
        ctx = jnp.einsum('nst,tnd->snd', a, v).reshape(S * B, D)
        attn_out = ctx @ params['w_out'][l].T + params['b_out'][l]
        x2d = _layer_norm(x2d + attn_out, params['ln1_g'][l], params['ln1_b'][l])
        h = jnp.maximum(x2d @ params['w1'][l].T + params['b1'][l], 0.0)
        ff = h @ params['w2'][l].T + params['b2'][l]
        x2d = _layer_norm(x2d + ff, params['ln2_g'][l], params['ln2_b'][l])
        x = x2d.reshape(S, B, D)
    return (x.reshape(S * B, D) @ params['w_dec'].T + params['b_dec']).reshape(S, B, -1)


# ---------------------------------------------------------------------------
if __name__ == "__main__":
    ntoken, d_model, nhead, d_hid, nlayers = 50, 32, 2, 64, 2
    S, B = 8, 2

    key = jax.random.PRNGKey(0)
    k_tok, k_par = jax.random.split(key)

    tokens = jax.random.randint(k_tok, (S, B), 0, ntoken, dtype=jnp.int32)
    # causal additive mask (like generate_square_subsequent_mask; -1e9 instead of -inf)
    src_mask = jnp.where(jnp.tril(jnp.ones((S, S), jnp.bool_)), 0.0, -1e9).astype(jnp.float32)

    params = make_params(k_par, ntoken=ntoken, d_model=d_model, nhead=nhead,
                         d_hid=d_hid, nlayers=nlayers)
    # One-time weight formatting at parameter-load time (NOT inside the jitted forward).
    prep = prepare_params(params, nhead=nhead)

    fwd = jax.jit(partial(transformer_forward, nhead=nhead, nlayers=nlayers,
                          d_model=d_model, ntoken=ntoken))
    out = jax.block_until_ready(fwd(tokens, src_mask, prep))

    ref = reference_forward(tokens, src_mask, params,
                            nhead=nhead, nlayers=nlayers, d_model=d_model)
    assert out.shape == (S, B, ntoken)
    # bf16 MXU matmuls + bf16 activation writeback + approx reciprocal vs f32 reference
    assert jnp.allclose(out, ref, rtol=5e-2, atol=5e-2), "mismatch vs JAX reference"

    print("KERNEL_OK")
</pallas_src>

<mosaic_0001>
module attributes {stable_mosaic.version = 11 : i64} {
  func.func @encoder_layer_kernel(%arg0: i32, %arg1: i32, %arg2: memref<1x8x32xf32, #tpu.memory_space<vmem>>, %arg3: memref<1x8x32xf32, #tpu.memory_space<vmem>>, %arg4: memref<8x8xf32, #tpu.memory_space<vmem>>, %arg5: memref<1x32x96xbf16, #tpu.memory_space<vmem>>, %arg6: memref<1x32x32xbf16, #tpu.memory_space<vmem>>, %arg7: memref<1x32x64xbf16, #tpu.memory_space<vmem>>, %arg8: memref<1x64x32xbf16, #tpu.memory_space<vmem>>, %arg9: memref<1x8x96xf32, #tpu.memory_space<vmem>>, %arg10: memref<1x8x32xbf16, #tpu.memory_space<vmem>>, %arg11: memref<1x8x32xf32, #tpu.memory_space<vmem>>) attributes {dimension_semantics = [#tpu.dimension_semantics<parallel>, #tpu.dimension_semantics<arbitrary>], iteration_bounds = array<i64: 2, 2>, scalar_prefetch = 0 : i64, scratch_operands = 1 : i64, tpu.core_type = #tpu.core_type<tc>, window_params = [{transform_indices = @transform_0, window_bounds = array<i64: 1, 8, 32>}, {pipeline_mode = #tpu.pipeline_mode<synchronous>, transform_indices = @transform_1, window_bounds = array<i64: 1, 8, 32>}, {pipeline_mode = #tpu.pipeline_mode<synchronous>, transform_indices = @transform_2, window_bounds = array<i64: 8, 8>}, {transform_indices = @transform_3, window_bounds = array<i64: 1, 32, 96>}, {transform_indices = @transform_4, window_bounds = array<i64: 1, 32, 32>}, {transform_indices = @transform_5, window_bounds = array<i64: 1, 32, 64>}, {transform_indices = @transform_6, window_bounds = array<i64: 1, 64, 32>}, {transform_indices = @transform_7, window_bounds = array<i64: 1, 8, 96>}, {transform_indices = @transform_8, window_bounds = array<i64: 1, 8, 32>}]} {
    %c0_i32 = arith.constant 0 : i32
    %0 = arith.cmpi eq, %arg1, %c0_i32 : i32
    %1 = arith.extui %0 : i1 to i32
    %c0_i32_0 = arith.constant 0 : i32
    %2 = arith.cmpi ne, %1, %c0_i32_0 : i32
    scf.if %2 {
      %c0_46 = arith.constant 0 : index
      %c0_47 = arith.constant 0 : index
      %c0_48 = arith.constant 0 : index
      %154 = vector.load %arg2[%c0_46, %c0_47, %c0_48] : memref<1x8x32xf32, #tpu.memory_space<vmem>>, vector<1x8x32xf32>
      %c0_49 = arith.constant 0 : index
      %c0_50 = arith.constant 0 : index
      %c0_51 = arith.constant 0 : index
      %155 = vector.load %arg3[%c0_49, %c0_50, %c0_51] : memref<1x8x32xf32, #tpu.memory_space<vmem>>, vector<1x8x32xf32>
      %156 = arith.addf %154, %155 : vector<1x8x32xf32>
      %c0_52 = arith.constant 0 : index
      %c0_53 = arith.constant 0 : index
      %c0_54 = arith.constant 0 : index
      %157 = vector.load %arg11[%c0_52, %c0_53, %c0_54] : memref<1x8x32xf32, #tpu.memory_space<vmem>>, vector<1x8x32xf32>
      tpu.vector_store %arg11[%c0_52, %c0_53, %c0_54], %156 {strides = array<i32>} : memref<1x8x32xf32, #tpu.memory_space<vmem>>, vector<1x8x32xf32>,
    } else {
    }
    %c0 = arith.constant 0 : index
    %c0_1 = arith.constant 0 : index
    %c0_2 = arith.constant 0 : index
    %3 = vector.load %arg11[%c0, %c0_1, %c0_2] : memref<1x8x32xf32, #tpu.memory_space<vmem>>, vector<1x8x32xf32>
    %4 = vector.shape_cast %3 : vector<1x8x32xf32> to vector<8x32xf32>
    %c0_3 = arith.constant 0 : index
    %c0_4 = arith.constant 0 : index
    %5 = vector.load %arg4[%c0_3, %c0_4] : memref<8x8xf32, #tpu.memory_space<vmem>>, vector<8x8xf32>
    %6 = vector.shape_cast %5 : vector<8x8xf32> to vector<1x8x8xf32>
    %c0_5 = arith.constant 0 : index
    %c0_6 = arith.constant 0 : index
    %c0_7 = arith.constant 0 : index
    %7 = vector.load %arg9[%c0_5, %c0_6, %c0_7] : memref<1x8x96xf32, #tpu.memory_space<vmem>>, vector<1x8x96xf32>
    %8 = vector.shape_cast %7 : vector<1x8x96xf32> to vector<8x96xf32>
    %9 = vector.extract_strided_slice %8 {offsets = [0, 0], sizes = [1, 96], strides = [1, 1]} : vector<8x96xf32> to vector<1x96xf32>
    %10 = vector.shape_cast %9 : vector<1x96xf32> to vector<96xf32>
    %11 = vector.extract_strided_slice %8 {offsets = [1, 0], sizes = [1, 32], strides = [1, 1]} : vector<8x96xf32> to vector<1x32xf32>
    %12 = vector.shape_cast %11 : vector<1x32xf32> to vector<32xf32>
    %13 = vector.extract_strided_slice %8 {offsets = [2, 0], sizes = [1, 32], strides = [1, 1]} : vector<8x96xf32> to vector<1x32xf32>
    %14 = vector.shape_cast %13 : vector<1x32xf32> to vector<32xf32>
    %15 = vector.extract_strided_slice %8 {offsets = [3, 0], sizes = [1, 32], strides = [1, 1]} : vector<8x96xf32> to vector<1x32xf32>
    %16 = vector.shape_cast %15 : vector<1x32xf32> to vector<32xf32>
    %17 = vector.extract_strided_slice %8 {offsets = [4, 0], sizes = [1, 64], strides = [1, 1]} : vector<8x96xf32> to vector<1x64xf32>
    %18 = vector.shape_cast %17 : vector<1x64xf32> to vector<64xf32>
    %19 = vector.extract_strided_slice %8 {offsets = [5, 0], sizes = [1, 32], strides = [1, 1]} : vector<8x96xf32> to vector<1x32xf32>
    %20 = vector.shape_cast %19 : vector<1x32xf32> to vector<32xf32>
    %21 = vector.extract_strided_slice %8 {offsets = [6, 0], sizes = [1, 32], strides = [1, 1]} : vector<8x96xf32> to vector<1x32xf32>
    %22 = vector.shape_cast %21 : vector<1x32xf32> to vector<32xf32>
    %23 = vector.extract_strided_slice %8 {offsets = [7, 0], sizes = [1, 32], strides = [1, 1]} : vector<8x96xf32> to vector<1x32xf32>
    %24 = vector.shape_cast %23 : vector<1x32xf32> to vector<32xf32>
    %25 = arith.truncf %4 : vector<8x32xf32> to vector<8x32xbf16>
    %c0_8 = arith.constant 0 : index
    %c0_9 = arith.constant 0 : index
    %c0_10 = arith.constant 0 : index
    %26 = vector.load %arg5[%c0_8, %c0_9, %c0_10] : memref<1x32x96xbf16, #tpu.memory_space<vmem>>, vector<1x32x96xbf16>
    %27 = vector.shape_cast %26 : vector<1x32x96xbf16> to vector<32x96xbf16>
    %cst = arith.constant dense<0.000000e+00> : vector<8x96xf32>
    %28 = tpu.matmul %25, %27, %cst {dimension_numbers = #tpu.dot_dimension_numbers<[1], [0], [0], [1], [0, 0, 1, 1], [], []>} : vector<8x32xbf16>, vector<32x96xbf16>, vector<8x96xf32> -> vector<8x96xf32>
    %29 = vector.shape_cast %10 : vector<96xf32> to vector<1x96xf32>
    %30 = vector.broadcast %29 : vector<1x96xf32> to vector<8x96xf32>
    %31 = arith.addf %28, %30 : vector<8x96xf32>
    %32 = arith.truncf %31 : vector<8x96xf32> to vector<8x96xbf16>
    %33 = vector.extract_strided_slice %32 {offsets = [0, 0], sizes = [8, 16], strides = [1, 1]} : vector<8x96xbf16> to vector<8x16xbf16>
    %34 = vector.shape_cast %33 : vector<8x16xbf16> to vector<1x8x16xbf16>
    %35 = vector.extract_strided_slice %32 {offsets = [0, 32], sizes = [8, 16], strides = [1, 1]} : vector<8x96xbf16> to vector<8x16xbf16>
    %36 = vector.shape_cast %35 : vector<8x16xbf16> to vector<1x8x16xbf16>
    %37 = vector.extract_strided_slice %32 {offsets = [0, 64], sizes = [8, 16], strides = [1, 1]} : vector<8x96xbf16> to vector<8x16xbf16>
    %38 = vector.shape_cast %37 : vector<8x16xbf16> to vector<1x8x16xbf16>
    "tpu.trace_start"() <{level = 10 : i32, message = "bqd,bkd->bqk"}> : () -> ()
    %cst_11 = arith.constant dense<0.000000e+00> : vector<1x8x8xf32>
    %39 = tpu.matmul %34, %36, %cst_11 {dimension_numbers = #tpu.dot_dimension_numbers<[2], [2], [1], [1], [0, 0, 0, 1, 1, 1], [0], [0]>} : vector<1x8x16xbf16>, vector<1x8x16xbf16>, vector<1x8x8xf32> -> vector<1x8x8xf32>
    "tpu.trace_stop"() : () -> ()
    %40 = arith.addf %39, %6 : vector<1x8x8xf32>
    %cst_12 = arith.constant dense<0xFF800000> : vector<1x8xf32>
    %41 = vector.multi_reduction <maximumf>, %40, %cst_12 [2] : vector<1x8x8xf32> to vector<1x8xf32>
    %42 = vector.shape_cast %41 : vector<1x8xf32> to vector<1x8x1xf32>
    %43 = vector.broadcast %42 : vector<1x8x1xf32> to vector<1x8x8xf32>
    %44 = arith.subf %40, %43 : vector<1x8x8xf32>
    %45 = math.exp %44 : vector<1x8x8xf32>
    %cst_13 = arith.constant dense<0.000000e+00> : vector<1x8xf32>
    %46 = vector.multi_reduction <add>, %45, %cst_13 [2] : vector<1x8x8xf32> to vector<1x8xf32>
    %47 = vector.shape_cast %46 : vector<1x8xf32> to vector<1x8x1xf32>
    %48 = tpu.reciprocal %47 {approx = true} : vector<1x8x1xf32> -> vector<1x8x1xf32>
    %49 = arith.truncf %45 : vector<1x8x8xf32> to vector<1x8x8xbf16>
    "tpu.trace_start"() <{level = 10 : i32, message = "bqk,bkd->bqd"}> : () -> ()
    %cst_14 = arith.constant dense<0.000000e+00> : vector<1x8x16xf32>
    %50 = tpu.matmul %49, %38, %cst_14 {dimension_numbers = #tpu.dot_dimension_numbers<[2], [1], [1], [2], [0, 0, 0, 1, 1, 2], [0], [0]>} : vector<1x8x8xbf16>, vector<1x8x16xbf16>, vector<1x8x16xf32> -> vector<1x8x16xf32>
    "tpu.trace_stop"() : () -> ()
    %51 = vector.broadcast %48 : vector<1x8x1xf32> to vector<1x8x16xf32>
    %52 = arith.mulf %50, %51 : vector<1x8x16xf32>
    %53 = arith.truncf %52 : vector<1x8x16xf32> to vector<1x8x16xbf16>
    %54 = vector.extract_strided_slice %32 {offsets = [0, 16], sizes = [8, 16], strides = [1, 1]} : vector<8x96xbf16> to vector<8x16xbf16>
    %55 = vector.shape_cast %54 : vector<8x16xbf16> to vector<1x8x16xbf16>
    %56 = vector.extract_strided_slice %32 {offsets = [0, 48], sizes = [8, 16], strides = [1, 1]} : vector<8x96xbf16> to vector<8x16xbf16>
    %57 = vector.shape_cast %56 : vector<8x16xbf16> to vector<1x8x16xbf16>
    %58 = vector.extract_strided_slice %32 {offsets = [0, 80], sizes = [8, 16], strides = [1, 1]} : vector<8x96xbf16> to vector<8x16xbf16>
    %59 = vector.shape_cast %58 : vector<8x16xbf16> to vector<1x8x16xbf16>
    "tpu.trace_start"() <{level = 10 : i32, message = "bqd,bkd->bqk"}> : () -> ()
    %cst_15 = arith.constant dense<0.000000e+00> : vector<1x8x8xf32>
    %60 = tpu.matmul %55, %57, %cst_15 {dimension_numbers = #tpu.dot_dimension_numbers<[2], [2], [1], [1], [0, 0, 0, 1, 1, 1], [0], [0]>} : vector<1x8x16xbf16>, vector<1x8x16xbf16>, vector<1x8x8xf32> -> vector<1x8x8xf32>
    "tpu.trace_stop"() : () -> ()
    %61 = arith.addf %60, %6 : vector<1x8x8xf32>
    %cst_16 = arith.constant dense<0xFF800000> : vector<1x8xf32>
    %62 = vector.multi_reduction <maximumf>, %61, %cst_16 [2] : vector<1x8x8xf32> to vector<1x8xf32>
    %63 = vector.shape_cast %62 : vector<1x8xf32> to vector<1x8x1xf32>
    %64 = vector.broadcast %63 : vector<1x8x1xf32> to vector<1x8x8xf32>
    %65 = arith.subf %61, %64 : vector<1x8x8xf32>
    %66 = math.exp %65 : vector<1x8x8xf32>
    %cst_17 = arith.constant dense<0.000000e+00> : vector<1x8xf32>
    %67 = vector.multi_reduction <add>, %66, %cst_17 [2] : vector<1x8x8xf32> to vector<1x8xf32>
    %68 = vector.shape_cast %67 : vector<1x8xf32> to vector<1x8x1xf32>
    %69 = tpu.reciprocal %68 {approx = true} : vector<1x8x1xf32> -> vector<1x8x1xf32>
    %70 = arith.truncf %66 : vector<1x8x8xf32> to vector<1x8x8xbf16>
    "tpu.trace_start"() <{level = 10 : i32, message = "bqk,bkd->bqd"}> : () -> ()
    %cst_18 = arith.constant dense<0.000000e+00> : vector<1x8x16xf32>
    %71 = tpu.matmul %70, %59, %cst_18 {dimension_numbers = #tpu.dot_dimension_numbers<[2], [1], [1], [2], [0, 0, 0, 1, 1, 2], [0], [0]>} : vector<1x8x8xbf16>, vector<1x8x16xbf16>, vector<1x8x16xf32> -> vector<1x8x16xf32>
    "tpu.trace_stop"() : () -> ()
    %72 = vector.broadcast %69 : vector<1x8x1xf32> to vector<1x8x16xf32>
    %73 = arith.mulf %71, %72 : vector<1x8x16xf32>
    %74 = arith.truncf %73 : vector<1x8x16xf32> to vector<1x8x16xbf16>
    %75 = tpu.concatenate %53, %74 in 2 : vector<1x8x16xbf16>, vector<1x8x16xbf16> -> vector<1x8x32xbf16>
    %76 = vector.shape_cast %75 : vector<1x8x32xbf16> to vector<8x32xbf16>
    %c0_19 = arith.constant 0 : index
    %c0_20 = arith.constant 0 : index
    %c0_21 = arith.constant 0 : index
    %77 = vector.load %arg6[%c0_19, %c0_20, %c0_21] : memref<1x32x32xbf16, #tpu.memory_space<vmem>>, vector<1x32x32xbf16>
    %78 = vector.shape_cast %77 : vector<1x32x32xbf16> to vector<32x32xbf16>
    %cst_22 = arith.constant dense<0.000000e+00> : vector<8x32xf32>
    %79 = tpu.matmul %76, %78, %cst_22 {dimension_numbers = #tpu.dot_dimension_numbers<[1], [0], [0], [1], [0, 0, 1, 1], [], []>} : vector<8x32xbf16>, vector<32x32xbf16>, vector<8x32xf32> -> vector<8x32xf32>
    %80 = vector.shape_cast %12 : vector<32xf32> to vector<1x32xf32>
    %81 = vector.broadcast %80 : vector<1x32xf32> to vector<8x32xf32>
    %82 = arith.addf %79, %81 : vector<8x32xf32>
    %83 = arith.addf %4, %82 : vector<8x32xf32>
    %cst_23 = arith.constant dense<0.000000e+00> : vector<8xf32>
    %84 = vector.multi_reduction <add>, %83, %cst_23 [1] : vector<8x32xf32> to vector<8xf32>
    %85 = vector.shape_cast %84 : vector<8xf32> to vector<8x1xf32>
    %cst_24 = arith.constant 3.200000e+01 : f32
    %86 = vector.broadcast %cst_24 : f32 to vector<8x1xf32>
    %87 = arith.divf %85, %86 : vector<8x1xf32>
    %88 = vector.broadcast %87 : vector<8x1xf32> to vector<8x32xf32>
    %89 = arith.subf %83, %88 : vector<8x32xf32>
    %90 = arith.mulf %89, %89 : vector<8x32xf32>
    %cst_25 = arith.constant dense<0.000000e+00> : vector<8xf32>
    %91 = vector.multi_reduction <add>, %90, %cst_25 [1] : vector<8x32xf32> to vector<8xf32>
    %92 = vector.shape_cast %91 : vector<8xf32> to vector<8x1xf32>
    %cst_26 = arith.constant 3.200000e+01 : f32
    %93 = vector.broadcast %cst_26 : f32 to vector<8x1xf32>
    %94 = arith.divf %92, %93 : vector<8x1xf32>
    %95 = vector.broadcast %87 : vector<8x1xf32> to vector<8x32xf32>
    %96 = arith.subf %83, %95 : vector<8x32xf32>
    %cst_27 = arith.constant 9.99999974E-6 : f32
    %97 = vector.broadcast %cst_27 : f32 to vector<8x1xf32>
    %98 = arith.addf %94, %97 : vector<8x1xf32>
    %99 = math.rsqrt %98 : vector<8x1xf32>
    %100 = vector.broadcast %99 : vector<8x1xf32> to vector<8x32xf32>
    %101 = arith.mulf %96, %100 : vector<8x32xf32>
    %102 = vector.shape_cast %14 : vector<32xf32> to vector<1x32xf32>
    %103 = vector.broadcast %102 : vector<1x32xf32> to vector<8x32xf32>
    %104 = arith.mulf %101, %103 : vector<8x32xf32>
    %105 = vector.shape_cast %16 : vector<32xf32> to vector<1x32xf32>
    %106 = vector.broadcast %105 : vector<1x32xf32> to vector<8x32xf32>
    %107 = arith.addf %104, %106 : vector<8x32xf32>
    %108 = arith.truncf %107 : vector<8x32xf32> to vector<8x32xbf16>
    %c0_28 = arith.constant 0 : index
    %c0_29 = arith.constant 0 : index
    %c0_30 = arith.constant 0 : index
    %109 = vector.load %arg7[%c0_28, %c0_29, %c0_30] : memref<1x32x64xbf16, #tpu.memory_space<vmem>>, vector<1x32x64xbf16>
    %110 = vector.shape_cast %109 : vector<1x32x64xbf16> to vector<32x64xbf16>
    %cst_31 = arith.constant dense<0.000000e+00> : vector<8x64xf32>
    %111 = tpu.matmul %108, %110, %cst_31 {dimension_numbers = #tpu.dot_dimension_numbers<[1], [0], [0], [1], [0, 0, 1, 1], [], []>} : vector<8x32xbf16>, vector<32x64xbf16>, vector<8x64xf32> -> vector<8x64xf32>
    %112 = vector.shape_cast %18 : vector<64xf32> to vector<1x64xf32>
    %113 = vector.broadcast %112 : vector<1x64xf32> to vector<8x64xf32>
    %114 = arith.addf %111, %113 : vector<8x64xf32>
    %cst_32 = arith.constant 0.000000e+00 : f32
    %115 = vector.broadcast %cst_32 : f32 to vector<8x64xf32>
    %116 = arith.maximumf %114, %115 : vector<8x64xf32>
    %117 = arith.truncf %116 : vector<8x64xf32> to vector<8x64xbf16>
    %c0_33 = arith.constant 0 : index
    %c0_34 = arith.constant 0 : index
    %c0_35 = arith.constant 0 : index
    %118 = vector.load %arg8[%c0_33, %c0_34, %c0_35] : memref<1x64x32xbf16, #tpu.memory_space<vmem>>, vector<1x64x32xbf16>
    %119 = vector.shape_cast %118 : vector<1x64x32xbf16> to vector<64x32xbf16>
    %cst_36 = arith.constant dense<0.000000e+00> : vector<8x32xf32>
    %120 = tpu.matmul %117, %119, %cst_36 {dimension_numbers = #tpu.dot_dimension_numbers<[1], [0], [0], [1], [0, 0, 1, 1], [], []>} : vector<8x64xbf16>, vector<64x32xbf16>, vector<8x32xf32> -> vector<8x32xf32>
    %121 = vector.shape_cast %20 : vector<32xf32> to vector<1x32xf32>
    %122 = vector.broadcast %121 : vector<1x32xf32> to vector<8x32xf32>
    %123 = arith.addf %120, %122 : vector<8x32xf32>
    %124 = arith.addf %107, %123 : vector<8x32xf32>
    %cst_37 = arith.constant dense<0.000000e+00> : vector<8xf32>
    %125 = vector.multi_reduction <add>, %124, %cst_37 [1] : vector<8x32xf32> to vector<8xf32>
    %126 = vector.shape_cast %125 : vector<8xf32> to vector<8x1xf32>
    %cst_38 = arith.constant 3.200000e+01 : f32
    %127 = vector.broadcast %cst_38 : f32 to vector<8x1xf32>
    %128 = arith.divf %126, %127 : vector<8x1xf32>
    %129 = vector.broadcast %128 : vector<8x1xf32> to vector<8x32xf32>
    %130 = arith.subf %124, %129 : vector<8x32xf32>
    %131 = arith.mulf %130, %130 : vector<8x32xf32>
    %cst_39 = arith.constant dense<0.000000e+00> : vector<8xf32>
    %132 = vector.multi_reduction <add>, %131, %cst_39 [1] : vector<8x32xf32> to vector<8xf32>
    %133 = vector.shape_cast %132 : vector<8xf32> to vector<8x1xf32>
    %cst_40 = arith.constant 3.200000e+01 : f32
    %134 = vector.broadcast %cst_40 : f32 to vector<8x1xf32>
    %135 = arith.divf %133, %134 : vector<8x1xf32>
    %136 = vector.broadcast %128 : vector<8x1xf32> to vector<8x32xf32>
    %137 = arith.subf %124, %136 : vector<8x32xf32>
    %cst_41 = arith.constant 9.99999974E-6 : f32
    %138 = vector.broadcast %cst_41 : f32 to vector<8x1xf32>
    %139 = arith.addf %135, %138 : vector<8x1xf32>
    %140 = math.rsqrt %139 : vector<8x1xf32>
    %141 = vector.broadcast %140 : vector<8x1xf32> to vector<8x32xf32>
    %142 = arith.mulf %137, %141 : vector<8x32xf32>
    %143 = vector.shape_cast %22 : vector<32xf32> to vector<1x32xf32>
    %144 = vector.broadcast %143 : vector<1x32xf32> to vector<8x32xf32>
    %145 = arith.mulf %142, %144 : vector<8x32xf32>
    %146 = vector.shape_cast %24 : vector<32xf32> to vector<1x32xf32>
    %147 = vector.broadcast %146 : vector<1x32xf32> to vector<8x32xf32>
    %148 = arith.addf %145, %147 : vector<8x32xf32>
    %149 = vector.shape_cast %148 : vector<8x32xf32> to vector<1x8x32xf32>
    %c0_42 = arith.constant 0 : index
    %c0_43 = arith.constant 0 : index
    %c0_44 = arith.constant 0 : index
    %150 = vector.load %arg11[%c0_42, %c0_43, %c0_44] : memref<1x8x32xf32, #tpu.memory_space<vmem>>, vector<1x8x32xf32>
    tpu.vector_store %arg11[%c0_42, %c0_43, %c0_44], %149 {strides = array<i32>} : memref<1x8x32xf32, #tpu.memory_space<vmem>>, vector<1x8x32xf32>,
    %c1_i32 = arith.constant 1 : i32
    %151 = arith.cmpi eq, %arg1, %c1_i32 : i32
    %152 = arith.extui %151 : i1 to i32
    %c0_i32_45 = arith.constant 0 : i32
    %153 = arith.cmpi ne, %152, %c0_i32_45 : i32
    scf.if %153 {
      %154 = arith.truncf %149 : vector<1x8x32xf32> to vector<1x8x32xbf16>
      %c0_46 = arith.constant 0 : index
      %c0_47 = arith.constant 0 : index
      %c0_48 = arith.constant 0 : index
      %155 = vector.load %arg10[%c0_46, %c0_47, %c0_48] : memref<1x8x32xbf16, #tpu.memory_space<vmem>>, vector<1x8x32xbf16>
      tpu.vector_store %arg10[%c0_46, %c0_47, %c0_48], %154 {strides = array<i32>} : memref<1x8x32xbf16, #tpu.memory_space<vmem>>, vector<1x8x32xbf16>,
    } else {
    }
    return
  }
  func.func @transform_0(%arg0: i32, %arg1: i32) -> (i32, i32, i32) {
    %c0_i32 = arith.constant 0 : i32
    %c0_i32_0 = arith.constant 0 : i32
    %c0_i32_1 = arith.constant 0 : i32
    return %arg0, %c0_i32, %c0_i32_0 : i32, i32, i32
  }
  func.func @transform_1(%arg0: i32, %arg1: i32) -> (i32, i32, i32) {
    %c0_i32 = arith.constant 0 : i32
    %c0_i32_0 = arith.constant 0 : i32
    %c0_i32_1 = arith.constant 0 : i32
    %c0_i32_2 = arith.constant 0 : i32
    return %c0_i32, %c0_i32_0, %c0_i32_1 : i32, i32, i32
  }
  func.func @transform_2(%arg0: i32, %arg1: i32) -> (i32, i32) {
    %c0_i32 = arith.constant 0 : i32
    %c0_i32_0 = arith.constant 0 : i32
    %c0_i32_1 = arith.constant 0 : i32
    return %c0_i32, %c0_i32_0 : i32, i32
  }
  func.func @transform_3(%arg0: i32, %arg1: i32) -> (i32, i32, i32) {
    %c0_i32 = arith.constant 0 : i32
    %c0_i32_0 = arith.constant 0 : i32
    %c0_i32_1 = arith.constant 0 : i32
    return %arg1, %c0_i32, %c0_i32_0 : i32, i32, i32
  }
  func.func @transform_4(%arg0: i32, %arg1: i32) -> (i32, i32, i32) {
    %c0_i32 = arith.constant 0 : i32
    %c0_i32_0 = arith.constant 0 : i32
    %c0_i32_1 = arith.constant 0 : i32
    return %arg1, %c0_i32, %c0_i32_0 : i32, i32, i32
  }
  func.func @transform_5(%arg0: i32, %arg1: i32) -> (i32, i32, i32) {
    %c0_i32 = arith.constant 0 : i32
    %c0_i32_0 = arith.constant 0 : i32
    %c0_i32_1 = arith.constant 0 : i32
    return %arg1, %c0_i32, %c0_i32_0 : i32, i32, i32
  }
  func.func @transform_6(%arg0: i32, %arg1: i32) -> (i32, i32, i32) {
    %c0_i32 = arith.constant 0 : i32
    %c0_i32_0 = arith.constant 0 : i32
    %c0_i32_1 = arith.constant 0 : i32
    return %arg1, %c0_i32, %c0_i32_0 : i32, i32, i32
  }
  func.func @transform_7(%arg0: i32, %arg1: i32) -> (i32, i32, i32) {
    %c0_i32 = arith.constant 0 : i32
    %c0_i32_0 = arith.constant 0 : i32
    %c0_i32_1 = arith.constant 0 : i32
    return %arg1, %c0_i32, %c0_i32_0 : i32, i32, i32
  }
  func.func @transform_8(%arg0: i32, %arg1: i32) -> (i32, i32, i32) {
    %c0_i32 = arith.constant 0 : i32
    %c0_i32_0 = arith.constant 0 : i32
    %c0_i32_1 = arith.constant 0 : i32
    return %arg0, %c0_i32, %c0_i32_0 : i32, i32, i32
  }
}

module attributes {stable_mosaic.version = 11 : i64} {
  func.func @decoder_kernel(%arg0: i32, %arg1: i32, %arg2: memref<16x32xbf16, #tpu.memory_space<vmem>>, %arg3: memref<32x128xbf16, #tpu.memory_space<vmem>>, %arg4: memref<1x128xf32, #tpu.memory_space<vmem>>, %arg5: memref<16x128xf32, #tpu.memory_space<vmem>>) attributes {dimension_semantics = [#tpu.dimension_semantics<parallel>, #tpu.dimension_semantics<parallel>], iteration_bounds = array<i64: 1, 1>, scalar_prefetch = 0 : i64, scratch_operands = 0 : i64, tpu.core_type = #tpu.core_type<tc>, window_params = [{transform_indices = @transform_0, window_bounds = array<i64: 16, 32>}, {transform_indices = @transform_1, window_bounds = array<i64: 32, 128>}, {transform_indices = @transform_2, window_bounds = array<i64: 1, 128>}, {transform_indices = @transform_3, window_bounds = array<i64: 16, 128>}]} {
    %c0 = arith.constant 0 : index
    %c0_0 = arith.constant 0 : index
    %0 = vector.load %arg2[%c0, %c0_0] : memref<16x32xbf16, #tpu.memory_space<vmem>>, vector<16x32xbf16>
    %c0_1 = arith.constant 0 : index
    %c0_2 = arith.constant 0 : index
    %1 = vector.load %arg3[%c0_1, %c0_2] : memref<32x128xbf16, #tpu.memory_space<vmem>>, vector<32x128xbf16>
    %cst = arith.constant dense<0.000000e+00> : vector<16x128xf32>
    %2 = tpu.matmul %0, %1, %cst {dimension_numbers = #tpu.dot_dimension_numbers<[1], [0], [0], [1], [0, 0, 1, 1], [], []>} : vector<16x32xbf16>, vector<32x128xbf16>, vector<16x128xf32> -> vector<16x128xf32>
    %c0_3 = arith.constant 0 : index
    %c0_4 = arith.constant 0 : index
    %3 = vector.load %arg4[%c0_3, %c0_4] : memref<1x128xf32, #tpu.memory_space<vmem>>, vector<1x128xf32>
    %4 = vector.broadcast %3 : vector<1x128xf32> to vector<16x128xf32>
    %5 = arith.addf %2, %4 : vector<16x128xf32>
    %c0_5 = arith.constant 0 : index
    %c0_6 = arith.constant 0 : index
    %6 = vector.load %arg5[%c0_5, %c0_6] : memref<16x128xf32, #tpu.memory_space<vmem>>, vector<16x128xf32>
    tpu.vector_store %arg5[%c0_5, %c0_6], %5 {strides = array<i32>} : memref<16x128xf32, #tpu.memory_space<vmem>>, vector<16x128xf32>,
    return
  }
  func.func @transform_0(%arg0: i32, %arg1: i32) -> (i32, i32) {
    %c0_i32 = arith.constant 0 : i32
    %c0_i32_0 = arith.constant 0 : i32
    return %arg0, %c0_i32 : i32, i32
  }
  func.func @transform_1(%arg0: i32, %arg1: i32) -> (i32, i32) {
    %c0_i32 = arith.constant 0 : i32
    %c0_i32_0 = arith.constant 0 : i32
    return %c0_i32, %arg1 : i32, i32
  }
  func.func @transform_2(%arg0: i32, %arg1: i32) -> (i32, i32) {
    %c0_i32 = arith.constant 0 : i32
    %c0_i32_0 = arith.constant 0 : i32
    return %c0_i32, %arg1 : i32, i32
  }
  func.func @transform_3(%arg0: i32, %arg1: i32) -> (i32, i32) {
    %c0_i32 = arith.constant 0 : i32
    return %arg0, %arg1 : i32, i32
  }
}

</mosaic_0001>

<llo_original>
// kernel: transformer_forward.3
$region0: #{transformer_forward.3}
  #allocation0 [shape = 'u32[]', space=smem, size = 0x4, offset = 0x4, fixed_abs, tag = 'smem constant byte address 0x4 - core index']
  #allocation1 [shape = 'u32[72,128]{1,0:T(1,128)}', space=vmem, size = 0x9000, scoped, tag = 'internal scratch']
  %s0 = inlined_call_operand.vmem [shape: bf16[16,32], index: 0, kind: input, shape index: {}]
  %s1 = inlined_call_operand.vmem [shape: bf16[32,128], index: 1, kind: input, shape index: {}]
  %s2 = inlined_call_operand.vmem [shape: f32[1,128], index: 2, kind: input, shape index: {}]
  %s3 = inlined_call_operand.vmem [shape: f32[16,128], index: 3, kind: output, shape index: {}]
  %s4 = sld [smem:[#allocation0]]
  $region22: #{transformer_forward.3} parent=0
    _
  %s6 = ssub.s32 1, %s4
  %s7 = scalar_select 0, %s6, %s4
  // Predicated region
  $region2: #{transformer_forward.3} parent=0 // pred_check
    _
  $region3: #{transformer_forward.3} parent=0 // pred_check_branch
    %9 = sbr.rel (0) target = $region5
  $region4: #{transformer_forward.3} parent=0 // pred_region
    _
  $region5: #{transformer_forward.3} parent=0 // pred_fallthru
    _
  // Predicated region
  $region6: #{transformer_forward.3} parent=0 // pred_check
    _
  $region7: #{transformer_forward.3} parent=0 // pred_check_branch
    %11 = sbr.rel (0) target = $region9
  $region8: #{transformer_forward.3} parent=0 // pred_region
    _
  $region9: #{transformer_forward.3} parent=0 // pred_fallthru
    _
  // Predicated region
  $region10: #{transformer_forward.3} parent=0 // pred_check
    _
  $region11: #{transformer_forward.3} parent=0 // pred_check_branch
    %13 = sbr.rel (0) target = $region13
  $region12: #{transformer_forward.3} parent=0 // pred_region
    _
  $region13: #{transformer_forward.3} parent=0 // pred_fallthru
    _
  %v15 = vld [vmem:[%s0] sm:$0xf]
  %v16 = vld [vmem:[%s0 + $0x4] sm:$0xf]
  %v17 = vld [vmem:[%s1] sm:$0xf]
  %v18 = vld [vmem:[%s1 + $0x4] sm:$0xf]
  %v19 = vld [vmem:[%s1 + $0x8] sm:$0xf]
  %v20 = vld [vmem:[%s1 + $0xc] sm:$0xf]
  %v21 = vld [vmem:[%s2] sm:$0x1]
  %v23 = vperm.slane %v21, 0
  %v27 = vunpack.c.l.b16 %v15
  %v28 = vunpack.c.l.b16 %v16
  %v29 = vpack.c.b16 %v28, %v27
  %v34 = vunpack.c.l.b16 %v17
  %v35 = vunpack.c.l.b16 %v18
  %v36 = vunpack.c.l.b16 %v19
  %v37 = vunpack.c.l.b16 %v20
  %v38 = vpack.c.b16 %v35, %v34
  %v39 = vpack.c.b16 %v37, %v36
  %vm42 = vcmask 261120
  %v44 = vsel %vm42, %v29, 0
  %46 = vmatpush.bf16.msra.mxu0 0
  %47 = vmatpush.bf16.msra.mxu0 0
  %48 = vmatpush.bf16.msra.mxu0 0
  %49 = vmatpush.bf16.msra.mxu0 0
  %50 = vmatpush.bf16.msra.mxu0 0
  %51 = vmatpush.bf16.msra.mxu0 0
  %52 = vmatpush.bf16.msra.mxu0 %v39
  %53 = vmatpush.bf16.msra.mxu0 %v38
  %54 = vmatmul.bf16.gmra.mxu0 %v44
  %v55 = vpop.f32.mrf.mxu0
  %v56 = vadd.f32 %v23, %v55
  %v57 = vpop.f32.mrf.mxu0
  %v58 = vadd.f32 %v23, %v57
  %59 = vdwg.mxu0
  %60 = vst [vmem:[%s3] sm:$0xff] %v56
  %61 = vst [vmem:[%s3 + $0x8] sm:$0xff] %v58
  // Predicated region
  $region14: #{transformer_forward.3} parent=0 // pred_check
    _
  $region15: #{transformer_forward.3} parent=0 // pred_check_branch
    %63 = sbr.rel (0) target = $region17
  $region16: #{transformer_forward.3} parent=0 // pred_region
    _
  $region17: #{transformer_forward.3} parent=0 // pred_fallthru
    _
  // Predicated region
  $region18: #{transformer_forward.3} parent=0 // pred_check
    _
  $region19: #{transformer_forward.3} parent=0 // pred_check_branch
    %65 = sbr.rel (0) target = $region21
  $region20: #{transformer_forward.3} parent=0 // pred_region
    _
  $region21: #{transformer_forward.3} parent=0 // pred_fallthru
    _

// kernel: transformer_forward.2
$region0: #{transformer_forward.2}
  #allocation0 [shape = 'u32[]', space=smem, size = 0x4, offset = 0x4, fixed_abs, tag = 'smem constant byte address 0x4 - core index']
  #allocation1 [shape = 'u32[72,128]{1,0:T(1,128)}', space=vmem, size = 0x9000, scoped, tag = 'internal scratch']
  #allocation2 [shape = 'f32[1,8,32]{2,1,0:T(8,128)}', space=vmem, size = 0x1000, scoped, tag = 'scratch operand']
  %s0 = inlined_call_operand.vmem [shape: f32[2,8,32], index: 0, kind: input, shape index: {}]
  %s1 = inlined_call_operand.vmem [shape: f32[1,8,32], index: 1, kind: input, shape index: {}]
  %s2 = inlined_call_operand.vmem [shape: f32[8,8], index: 2, kind: input, shape index: {}]
  %s3 = inlined_call_operand.vmem [shape: bf16[2,32,96], index: 3, kind: input, shape index: {}]
  %s4 = inlined_call_operand.vmem [shape: bf16[2,32,32], index: 4, kind: input, shape index: {}]
  %s5 = inlined_call_operand.vmem [shape: bf16[2,32,64], index: 5, kind: input, shape index: {}]
  %s6 = inlined_call_operand.vmem [shape: bf16[2,64,32], index: 6, kind: input, shape index: {}]
  %s7 = inlined_call_operand.vmem [shape: f32[2,8,96], index: 7, kind: input, shape index: {}]
  %s8 = inlined_call_operand.vmem [shape: bf16[2,8,32], index: 8, kind: output, shape index: {}]
  %s9 = sld [smem:[#allocation0]]
  $region73: #{transformer_forward.2} parent=0
    _
  %s11 = ssub.s32 1, %s9
  %s12 = scalar_select 0, %s11, %s9
  loop: start=0, step=1, limit=6
  $region2: #{transformer_forward.2} parent=0 // loop_pre_header
    _
  $region3: #{transformer_forward.2} parent=0 // loop_header
    %s14 = sphi 0, %s18
    %p15 = scmp.ge.s32.totalorder %s14, 6
    %s21 = sphi 0, %s33
    %s22 = sphi 0, %s29
    %s23 = sphi 0, %s21
    %s24 = sphi 0, %s22
    %s25 = sphi 0, %s23
    %s26 = sphi 0, %s24
    %s36 = sphi 0, %s38
    %s39 = sphi 0, %s36
    %s40 = sphi 0, %s39
    %s56 = sphi 0, %s40
    %s60 = sphi 0, %s60
    %s62 = sphi 0, %s60
    %s63 = sphi 0, %s62
    %s77 = sphi 0, %s63
    %s81 = sphi 0, %s81
    %s83 = sphi 0, %s81
    %s84 = sphi 0, %s83
    %s98 = sphi 0, %s84
    %s104 = sphi 0, %s106
    %s107 = sphi 0, %s104
    %s108 = sphi 0, %s107
    %s124 = sphi 0, %s108
    %s130 = sphi 0, %s132
    %s133 = sphi 0, %s130
    %s134 = sphi 0, %s133
    %s150 = sphi 0, %s134
    %s156 = sphi 0, %s158
    %s159 = sphi 0, %s156
    %s160 = sphi 0, %s159
    %s176 = sphi 0, %s160
    %s182 = sphi 0, %s184
    %s185 = sphi 0, %s182
    %s186 = sphi 0, %s185
    %s202 = sphi 0, %s186
    %s208 = sphi 0, %s210
    %s211 = sphi 0, %s208
    %s212 = sphi 0, %s211
    %s228 = sphi 0, %s212
    %s234 = sphi 0, %s236
    %s237 = sphi 0, %s234
    %s238 = sphi 0, %s237
    %s254 = sphi 0, %s238
  $region4: #{transformer_forward.2} parent=0 // loop_header_branch
    %17 = sbr.rel (%p15) target = $region8
  $region5: #{transformer_forward.2} parent=0 // loop_body
    %s19 = ssub.s32 %s14, 1
    %s20 = ssub.s32 %s14, 2
    %s27 = sadd.s32 1, %s22
    %p28 = scmp.ge.s32.totalorder %s27, 2
    %s29 = scalar_select %p28, 0, %s27
    %s30 = sadd.s32 1, %s21
    %s31 = scalar_select %p28, %s30, %s21
    %p32 = scmp.ge.s32.totalorder %s31, 2
    %s33 = scalar_select %p32, 0, %s31
    %s34 = ssub.s32 %s21, %s33
    %p35 = scmp.eq.s32.totalorder %s34, 0
    %s37 = sadd.s32 %s36, 1
    %s38 = scalar_select %p35, %s36, %s37
    %p41 = pneg %p35
    %p42 = scmp.eq.s32.totalorder %s14, 3
    %p43 = por %p41, %p42
    %p44 = scmp.ne.s32.totalorder %s36, %s39
    %p45 = scmp.eq.s32.totalorder %s14, 0
    %p46 = por %p44, %p45
    %p47 = scmp.ne.s32.totalorder %s36, %s39
    %p48 = scmp.eq.s32.totalorder %s19, 3
    %p49 = por %p47, %p48
    %p50 = scmp.ne.s32.totalorder %s39, %s40
    %p51 = scmp.eq.s32.totalorder %s19, 0
    %p52 = por %p50, %p51
    %p53 = scmp.ne.s32.totalorder %s39, %s40
    %p54 = scmp.eq.s32.totalorder %s20, 3
    %p55 = por %p53, %p54
    %p57 = scmp.ne.s32.totalorder %s40, %s56
    %p58 = scmp.eq.s32.totalorder %s20, 0
    %p59 = por %p57, %p58
    %s61 = sadd.s32 %s60, 1
    %p64 = scmp.eq.s32.totalorder %s14, 3
    %p65 = scmp.ne.s32.totalorder %s60, %s62
    %p66 = scmp.eq.s32.totalorder %s14, 0
    %p67 = por %p65, %p66
    %p68 = scmp.ne.s32.totalorder %s60, %s62
    %p69 = scmp.eq.s32.totalorder %s19, 3
    %p70 = por %p68, %p69
    %p71 = scmp.ne.s32.totalorder %s62, %s63
    %p72 = scmp.eq.s32.totalorder %s19, 0
    %p73 = por %p71, %p72
    %p74 = scmp.ne.s32.totalorder %s62, %s63
    %p75 = scmp.eq.s32.totalorder %s20, 3
    %p76 = por %p74, %p75
    %p78 = scmp.ne.s32.totalorder %s63, %s77
    %p79 = scmp.eq.s32.totalorder %s20, 0
    %p80 = por %p78, %p79
    %s82 = sadd.s32 %s81, 1
    %p85 = scmp.eq.s32.totalorder %s14, 3
    %p86 = scmp.ne.s32.totalorder %s81, %s83
    %p87 = scmp.eq.s32.totalorder %s14, 0
    %p88 = por %p86, %p87
    %p89 = scmp.ne.s32.totalorder %s81, %s83
    %p90 = scmp.eq.s32.totalorder %s19, 3
    %p91 = por %p89, %p90
    %p92 = scmp.ne.s32.totalorder %s83, %s84
    %p93 = scmp.eq.s32.totalorder %s19, 0
    %p94 = por %p92, %p93
    %p95 = scmp.ne.s32.totalorder %s83, %s84
    %p96 = scmp.eq.s32.totalorder %s20, 3
    %p97 = por %p95, %p96
    %p99 = scmp.ne.s32.totalorder %s84, %s98
    %p100 = scmp.eq.s32.totalorder %s20, 0
    %p101 = por %p99, %p100
    %s102 = ssub.s32 %s22, %s29
    %p103 = scmp.eq.s32.totalorder %s102, 0
    %s105 = sadd.s32 %s104, 1
    %s106 = scalar_select %p103, %s104, %s105
    %p109 = pneg %p103
    %p110 = scmp.eq.s32.totalorder %s14, 3
    %p111 = por %p109, %p110
    %p112 = scmp.ne.s32.totalorder %s104, %s107
    %p113 = scmp.eq.s32.totalorder %s14, 0
    %p114 = por %p112, %p113
    %p115 = scmp.ne.s32.totalorder %s104, %s107
    %p116 = scmp.eq.s32.totalorder %s19, 3
    %p117 = por %p115, %p116
    %p118 = scmp.ne.s32.totalorder %s107, %s108
    %p119 = scmp.eq.s32.totalorder %s19, 0
    %p120 = por %p118, %p119
    %p121 = scmp.ne.s32.totalorder %s107, %s108
    %p122 = scmp.eq.s32.totalorder %s20, 3
    %p123 = por %p121, %p122
    %p125 = scmp.ne.s32.totalorder %s108, %s124
    %p126 = scmp.eq.s32.totalorder %s20, 0
    %p127 = por %p125, %p126
    %s128 = ssub.s32 %s22, %s29
    %p129 = scmp.eq.s32.totalorder %s128, 0
    %s131 = sadd.s32 %s130, 1
    %s132 = scalar_select %p129, %s130, %s131
    %p135 = pneg %p129
    %p136 = scmp.eq.s32.totalorder %s14, 3
    %p137 = por %p135, %p136
    %p138 = scmp.ne.s32.totalorder %s130, %s133
    %p139 = scmp.eq.s32.totalorder %s14, 0
    %p140 = por %p138, %p139
    %p141 = scmp.ne.s32.totalorder %s130, %s133
    %p142 = scmp.eq.s32.totalorder %s19, 3
    %p143 = por %p141, %p142
    %p144 = scmp.ne.s32.totalorder %s133, %s134
    %p145 = scmp.eq.s32.totalorder %s19, 0
    %p146 = por %p144, %p145
    %p147 = scmp.ne.s32.totalorder %s133, %s134
    %p148 = scmp.eq.s32.totalorder %s20, 3
    %p149 = por %p147, %p148
    %p151 = scmp.ne.s32.totalorder %s134, %s150
    %p152 = scmp.eq.s32.totalorder %s20, 0
    %p153 = por %p151, %p152
    %s154 = ssub.s32 %s22, %s29
    %p155 = scmp.eq.s32.totalorder %s154, 0
    %s157 = sadd.s32 %s156, 1
    %s158 = scalar_select %p155, %s156, %s157
    %p161 = pneg %p155
    %p162 = scmp.eq.s32.totalorder %s14, 3
    %p163 = por %p161, %p162
    %p164 = scmp.ne.s32.totalorder %s156, %s159
    %p165 = scmp.eq.s32.totalorder %s14, 0
    %p166 = por %p164, %p165
    %p167 = scmp.ne.s32.totalorder %s156, %s159
    %p168 = scmp.eq.s32.totalorder %s19, 3
    %p169 = por %p167, %p168
    %p170 = scmp.ne.s32.totalorder %s159, %s160
    %p171 = scmp.eq.s32.totalorder %s19, 0
    %p172 = por %p170, %p171
    %p173 = scmp.ne.s32.totalorder %s159, %s160
    %p174 = scmp.eq.s32.totalorder %s20, 3
    %p175 = por %p173, %p174
    %p177 = scmp.ne.s32.totalorder %s160, %s176
    %p178 = scmp.eq.s32.totalorder %s20, 0
    %p179 = por %p177, %p178
    %s180 = ssub.s32 %s22, %s29
    %p181 = scmp.eq.s32.totalorder %s180, 0
    %s183 = sadd.s32 %s182, 1
    %s184 = scalar_select %p181, %s182, %s183
    %p187 = pneg %p181
    %p188 = scmp.eq.s32.totalorder %s14, 3
    %p189 = por %p187, %p188
    %p190 = scmp.ne.s32.totalorder %s182, %s185
    %p191 = scmp.eq.s32.totalorder %s14, 0
    %p192 = por %p190, %p191
    %p193 = scmp.ne.s32.totalorder %s182, %s185
    %p194 = scmp.eq.s32.totalorder %s19, 3
    %p195 = por %p193, %p194
    %p196 = scmp.ne.s32.totalorder %s185, %s186
    %p197 = scmp.eq.s32.totalorder %s19, 0
    %p198 = por %p196, %p197
    %p199 = scmp.ne.s32.totalorder %s185, %s186
    %p200 = scmp.eq.s32.totalorder %s20, 3
    %p201 = por %p199, %p200
    %p203 = scmp.ne.s32.totalorder %s186, %s202
    %p204 = scmp.eq.s32.totalorder %s20, 0
    %p205 = por %p203, %p204
    %s206 = ssub.s32 %s22, %s29
    %p207 = scmp.eq.s32.totalorder %s206, 0
    %s209 = sadd.s32 %s208, 1
    %s210 = scalar_select %p207, %s208, %s209
    %p213 = pneg %p207
    %p214 = scmp.eq.s32.totalorder %s14, 3
    %p215 = por %p213, %p214
    %p216 = scmp.ne.s32.totalorder %s208, %s211
    %p217 = scmp.eq.s32.totalorder %s14, 0
    %p218 = por %p216, %p217
    %p219 = scmp.ne.s32.totalorder %s208, %s211
    %p220 = scmp.eq.s32.totalorder %s19, 3
    %p221 = por %p219, %p220
    %p222 = scmp.ne.s32.totalorder %s211, %s212
    %p223 = scmp.eq.s32.totalorder %s19, 0
    %p224 = por %p222, %p223
    %p225 = scmp.ne.s32.totalorder %s211, %s212
    %p226 = scmp.eq.s32.totalorder %s20, 3
    %p227 = por %p225, %p226
    %p229 = scmp.ne.s32.totalorder %s212, %s228
    %p230 = scmp.eq.s32.totalorder %s20, 0
    %p231 = por %p229, %p230
    %s232 = ssub.s32 %s21, %s33
    %p233 = scmp.eq.s32.totalorder %s232, 0
    %s235 = sadd.s32 %s234, 1
    %s236 = scalar_select %p233, %s234, %s235
    %p239 = pneg %p233
    %p240 = scmp.eq.s32.totalorder %s14, 3
    %p241 = por %p239, %p240
    %p242 = scmp.ne.s32.totalorder %s234, %s237
    %p243 = scmp.eq.s32.totalorder %s14, 0
    %p244 = por %p242, %p243
    %p245 = scmp.ne.s32.totalorder %s234, %s237
    %p246 = scmp.eq.s32.totalorder %s19, 3
    %p247 = por %p245, %p246
    %p248 = scmp.ne.s32.totalorder %s237, %s238
    %p249 = scmp.eq.s32.totalorder %s19, 0
    %p250 = por %p248, %p249
    %p251 = scmp.ne.s32.totalorder %s237, %s238
    %p252 = scmp.eq.s32.totalorder %s20, 3
    %p253 = por %p251, %p252
    %p255 = scmp.ne.s32.totalorder %s238, %s254
    %p256 = scmp.eq.s32.totalorder %s20, 0
    %p257 = por %p255, %p256
    %p258 = scmp.le.s32.totalorder 1, %s14
    %p259 = scmp.lt.s32.totalorder %s14, 5
    %p260 = pnand %p258, %p259
    %p261 = pneg %p260
    // Predicated region
    $region9: #{transformer_forward.2} parent=5 // pred_check
      _
    $region10: #{transformer_forward.2} parent=5 // pred_check_branch
      %263 = sbr.rel (%p260) target = $region12
    $region11: #{transformer_forward.2} parent=5 // pred_region
      %s264 = ssub.s32 %s14, 1
      // Predicated region
      $region13: #{transformer_forward.2} parent=11 // pred_check
        %p265 = pneg %p73
      $region14: #{transformer_forward.2} parent=11 // pred_check_branch
        %267 = sbr.rel (%p265) target = $region16
      $region15: #{transformer_forward.2} parent=11 // pred_region
        _
      $region16: #{transformer_forward.2} parent=11 // pred_fallthru
        _
      // Predicated region
      $region17: #{transformer_forward.2} parent=11 // pred_check
        %p268 = pneg %p94
      $region18: #{transformer_forward.2} parent=11 // pred_check_branch
        %270 = sbr.rel (%p268) target = $region20
      $region19: #{transformer_forward.2} parent=11 // pred_region
        _
      $region20: #{transformer_forward.2} parent=11 // pred_fallthru
        _
    $region12: #{transformer_forward.2} parent=5 // pred_fallthru
      _
    %p271 = scmp.lt.s32.totalorder %s14, 4
    // Predicated region
    $region21: #{transformer_forward.2} parent=5 // pred_check
      %p272 = pneg %p271
    $region22: #{transformer_forward.2} parent=5 // pred_check_branch
      %274 = sbr.rel (%p272) target = $region24
    $region23: #{transformer_forward.2} parent=5 // pred_region
      // Predicated region
      $region25: #{transformer_forward.2} parent=23 // pred_check
        %p275 = pneg %p46
      $region26: #{transformer_forward.2} parent=23 // pred_check_branch
        %277 = sbr.rel (%p275) target = $region28
      $region27: #{transformer_forward.2} parent=23 // pred_region
        %p278 = scmp.lt.s32.totalorder %s21, 1
        %s279 = scalar_select %p278, %s21, 1
        %s280 = smul.addr %s279, 8
        %s281 = scalar_lea.vmem %s0, %s280
      $region28: #{transformer_forward.2} parent=23 // pred_fallthru
        _
      // Predicated region
      $region29: #{transformer_forward.2} parent=23 // pred_check
        %p282 = pneg %p114
      $region30: #{transformer_forward.2} parent=23 // pred_check_branch
        %284 = sbr.rel (%p282) target = $region32
      $region31: #{transformer_forward.2} parent=23 // pred_region
        %p285 = scmp.lt.s32.totalorder %s22, 1
        %s286 = scalar_select %p285, %s22, 1
        %s287 = smul.addr %s286, 4
        %s288 = smul.addr %s287, 4
        %s289 = scalar_lea.vmem %s3, %s288
      $region32: #{transformer_forward.2} parent=23 // pred_fallthru
        _
      // Predicated region
      $region33: #{transformer_forward.2} parent=23 // pred_check
        %p290 = pneg %p140
      $region34: #{transformer_forward.2} parent=23 // pred_check_branch
        %292 = sbr.rel (%p290) target = $region36
      $region35: #{transformer_forward.2} parent=23 // pred_region
        %p293 = scmp.lt.s32.totalorder %s22, 1
        %s294 = scalar_select %p293, %s22, 1
        %s295 = smul.addr %s294, 4
        %s296 = smul.addr %s295, 4
        %s297 = scalar_lea.vmem %s4, %s296
      $region36: #{transformer_forward.2} parent=23 // pred_fallthru
        _
      // Predicated region
      $region37: #{transformer_forward.2} parent=23 // pred_check
        %p298 = pneg %p166
      $region38: #{transformer_forward.2} parent=23 // pred_check_branch
        %300 = sbr.rel (%p298) target = $region40
      $region39: #{transformer_forward.2} parent=23 // pred_region
        %p301 = scmp.lt.s32.totalorder %s22, 1
        %s302 = scalar_select %p301, %s22, 1
        %s303 = smul.addr %s302, 4
        %s304 = smul.addr %s303, 4
        %s305 = scalar_lea.vmem %s5, %s304
      $region40: #{transformer_forward.2} parent=23 // pred_fallthru
        _
      // Predicated region
      $region41: #{transformer_forward.2} parent=23 // pred_check
        %p306 = pneg %p192
      $region42: #{transformer_forward.2} parent=23 // pred_check_branch
        %308 = sbr.rel (%p306) target = $region44
      $region43: #{transformer_forward.2} parent=23 // pred_region
        %p309 = scmp.lt.s32.totalorder %s22, 1
        %s310 = scalar_select %p309, %s22, 1
        %s311 = smul.addr %s310, 8
        %s312 = smul.addr %s311, 4
        %s313 = scalar_lea.vmem %s6, %s312
      $region44: #{transformer_forward.2} parent=23 // pred_fallthru
        _
      // Predicated region
      $region45: #{transformer_forward.2} parent=23 // pred_check
        %p314 = pneg %p218
      $region46: #{transformer_forward.2} parent=23 // pred_check_branch
        %316 = sbr.rel (%p314) target = $region48
      $region47: #{transformer_forward.2} parent=23 // pred_region
        %p317 = scmp.lt.s32.totalorder %s22, 1
        %s318 = scalar_select %p317, %s22, 1
        %s319 = smul.addr %s318, 8
        %s320 = scalar_lea.vmem %s7, %s319
      $region48: #{transformer_forward.2} parent=23 // pred_fallthru
        _
    $region24: #{transformer_forward.2} parent=5 // pred_fallthru
      _
    %p321 = scmp.le.s32.totalorder 1, %s14
    %p322 = scmp.lt.s32.totalorder %s14, 5
    %p323 = pnand %p321, %p322
    %p324 = pneg %p323
    // Predicated region
    $region49: #{transformer_forward.2} parent=5 // pred_check
      _
    $region50: #{transformer_forward.2} parent=5 // pred_check_branch
      %326 = sbr.rel (%p323) target = $region52
    $region51: #{transformer_forward.2} parent=5 // pred_region
      %s327 = ssub.s32 %s14, 1
      %p328 = scmp.lt.s32.totalorder %s23, 1
      %s329 = scalar_select %p328, %s23, 1
      %s330 = smul.addr %s329, 8
      %s331 = scalar_lea.vmem %s0, %s330
      %p332 = pneg %p52
      %p333 = pneg %p49
      %p334 = pneg %p73
      %p335 = pneg %p70
      %p336 = pneg %p94
      %p337 = pneg %p91
      %p338 = scmp.lt.s32.totalorder %s24, 1
      %s339 = scalar_select %p338, %s24, 1
      %s340 = smul.addr %s339, 4
      %s341 = smul.addr %s340, 4
      %s342 = scalar_lea.vmem %s3, %s341
      %p343 = pneg %p120
      %p344 = pneg %p117
      %p345 = scmp.lt.s32.totalorder %s24, 1
      %s346 = scalar_select %p345, %s24, 1
      %s347 = smul.addr %s346, 4
      %s348 = smul.addr %s347, 4
      %s349 = scalar_lea.vmem %s4, %s348
      %p350 = pneg %p146
      %p351 = pneg %p143
      %p352 = scmp.lt.s32.totalorder %s24, 1
      %s353 = scalar_select %p352, %s24, 1
      %s354 = smul.addr %s353, 4
      %s355 = smul.addr %s354, 4
      %s356 = scalar_lea.vmem %s5, %s355
      %p357 = pneg %p172
      %p358 = pneg %p169
      %p359 = scmp.lt.s32.totalorder %s24, 1
      %s360 = scalar_select %p359, %s24, 1
      %s361 = smul.addr %s360, 8
      %s362 = smul.addr %s361, 4
      %s363 = scalar_lea.vmem %s6, %s362
      %p364 = pneg %p198
      %p365 = pneg %p195
      %p366 = scmp.lt.s32.totalorder %s24, 1
      %s367 = scalar_select %p366, %s24, 1
      %s368 = smul.addr %s367, 8
      %s369 = scalar_lea.vmem %s7, %s368
      %p370 = pneg %p224
      %p371 = pneg %p221
      %p372 = pneg %p250
      %p373 = pneg %p247
      %p374 = scmp.lt.s32.totalorder %s23, 1
      %s375 = scalar_select %p374, %s23, 1
      %s376 = smul.addr %s375, 4
      %s377 = scalar_lea.vmem %s8, %s376
      %p378 = scmp.lt.s32.totalorder %s23, 1
      %s379 = scalar_select %p378, %s23, 1
      %s380 = smul.addr %s379, 8
      %s381 = scalar_lea.vmem %s0, %s380
      %p382 = scmp.lt.s32.totalorder %s24, 1
      %s383 = scalar_select %p382, %s24, 1
      %s384 = smul.addr %s383, 4
      %s385 = smul.addr %s384, 4
      %s386 = scalar_lea.vmem %s3, %s385
      %p387 = scmp.lt.s32.totalorder %s24, 1
      %s388 = scalar_select %p387, %s24, 1
      %s389 = smul.addr %s388, 4
      %s390 = smul.addr %s389, 4
      %s391 = scalar_lea.vmem %s4, %s390
      %p392 = scmp.lt.s32.totalorder %s24, 1
      %s393 = scalar_select %p392, %s24, 1
      %s394 = smul.addr %s393, 4
      %s395 = smul.addr %s394, 4
      %s396 = scalar_lea.vmem %s5, %s395
      %p397 = scmp.lt.s32.totalorder %s24, 1
      %s398 = scalar_select %p397, %s24, 1
      %s399 = smul.addr %s398, 8
      %s400 = smul.addr %s399, 4
      %s401 = scalar_lea.vmem %s6, %s400
      %p402 = scmp.lt.s32.totalorder %s24, 1
      %s403 = scalar_select %p402, %s24, 1
      %s404 = smul.addr %s403, 8
      %s405 = scalar_lea.vmem %s7, %s404
      %p406 = scmp.lt.s32.totalorder %s23, 1
      %s407 = scalar_select %p406, %s23, 1
      %s408 = smul.addr %s407, 4
      %s409 = scalar_lea.vmem %s8, %s408
      %p411 = scmp.eq.s32.totalorder %s24, 0
      // Predicated region
      $region53: #{transformer_forward.2} parent=51 // pred_check
        %p412 = pneg %p411
      $region54: #{transformer_forward.2} parent=51 // pred_check_branch
        %414 = sbr.rel (%p412) target = $region56
      $region55: #{transformer_forward.2} parent=51 // pred_region
        %v415 = vld [vmem:[%s381] sm:$0xff]
        %v416 = vld [vmem:[%s1] sm:$0xff]
        %v417 = vadd.f32 %v415, %v416
        %vm418 = vcmask 261120
        %419 = vst.msk [vmem:[#allocation2] sm:$0xff] %vm418, %v417
      $region56: #{transformer_forward.2} parent=51 // pred_fallthru
        _
      %v420 = vld [vmem:[#allocation2] sm:$0xff]
      %v421 = vld [vmem:[%s2] sm:$0xff]
      %v422 = vld [vmem:[%s405] sm:$0xff]
      %v423 = vpack.c.bf16 %v420, %v420
      %v424 = vld [vmem:[%s386] sm:$0xf]
      %v425 = vld [vmem:[%s386 + $0x4] sm:$0xf]
      %v426 = vld [vmem:[%s386 + $0x8] sm:$0xf]
      %v427 = vld [vmem:[%s386 + $0xc] sm:$0xf]
      %v428 = vperm.slane %v422, 0
      %v433 = vunpack.c.l.b16 %v424
      %v434 = vunpack.c.l.b16 %v425
      %v435 = vunpack.c.l.b16 %v426
      %v436 = vunpack.c.l.b16 %v427
      %v437 = vpack.c.b16 %v434, %v433
      %v438 = vpack.c.b16 %v436, %v435
      %vm441 = vcmask 261120
      %v443 = vsel %vm441, %v423, 0
      %445 = vmatpush.bf16.msra.mxu0 0
      %446 = vmatpush.bf16.msra.mxu0 0
      %447 = vmatpush.bf16.msra.mxu0 0
      %448 = vmatpush.bf16.msra.mxu0 0
      %449 = vmatpush.bf16.msra.mxu0 0
      %450 = vmatpush.bf16.msra.mxu0 0
      %451 = vmatpush.bf16.msra.mxu0 %v438
      %452 = vmatpush.bf16.msra.mxu0 %v437
      %453 = vmatmul.bf16.gmra.mxu0 %v443
      %v454 = vpop.f32.mrf.mxu0
      %v455 = vadd.f32 %v428, %v454
      %v456 = vpop.f32.mrf.mxu0
      %457 = vdwg.mxu0
      %v458 = vpack.c.bf16 %v455, %v455
      %v460 = vunpack.c.l.b16 %v458
      %v461 = vpack.c.b16 %v460, %v460
      %462 = vrot.lane.b32.xlu0 %v461, 96
      %v463 = vpop.permute.xlu0 %462
      %vm464 = vcmask 130048
      %v466 = vsel %vm464, %v458, 0
      %v469 = vsel %vm464, %v463, 0
      %471 = vmatpush.bf16.xpose.msra.mxu0 0
      %472 = vmatpush.bf16.xpose.msra.mxu0 0
      %473 = vmatpush.bf16.xpose.msra.mxu0 0
      %474 = vmatpush.bf16.xpose.msra.mxu0 0
      %475 = vmatpush.bf16.xpose.msra.mxu0 0
      %476 = vmatpush.bf16.xpose.msra.mxu0 0
      %477 = vmatpush.bf16.xpose.msra.mxu0 0
      %478 = vmatpush.bf16.xpose.msra.mxu0 %v469
      %479 = vmatmul.bf16.gmra.mxu0 %v466
      %v480 = vpop.f32.mrf.mxu0
      %v481 = vadd.f32 %v421, %v480
      %v482 = vpop.f32.mrf.mxu0
      %483 = vdwg.mxu0
      %vm484 = vcmask 64512
      %v485 = vsel %vm484, %v481, -inf
      %486 = vmax.xlane.f32.xlu0 %v485
      %v487 = vpop.xlane.xlu0 %486
      %v488 = vsub.f32 %v481, %v487
      %v489 = vmul.f32 %v488, 1.442695
      %v490 = vpow.pop %v489
      %v491 = vsel %vm484, %v490, 0.0
      %492 = vadd.xlane.f32.xlu0 %v491
      %v493 = vpop.xlane.xlu0 %492
      %v494 = vrcp.pop %v493
      %v495 = vpack.c.bf16 %v490, %v490
      %496 = vrot.lane.b32.xlu0 %v461, 64
      %v497 = vpop.permute.xlu0 %496
      %v499 = vsel %vm484, %v495, 0
      %vm501 = vcmask 1043456
      %v503 = vsel %vm501, %v497, 0
      %505 = vmatpush.bf16.msra.mxu0 0
      %506 = vmatpush.bf16.msra.mxu0 0
      %507 = vmatpush.bf16.msra.mxu0 0
      %508 = vmatpush.bf16.msra.mxu0 0
      %509 = vmatpush.bf16.msra.mxu0 0
      %510 = vmatpush.bf16.msra.mxu0 0
      %511 = vmatpush.bf16.msra.mxu0 0
      %512 = vmatpush.bf16.msra.mxu0 %v503
      %513 = vmatmul.bf16.gmra.mxu0 %v499
      %v514 = vpop.f32.mrf.mxu0
      %v515 = vadd.f32 0.0, %v514
      %v516 = vpop.f32.mrf.mxu0
      %517 = vdwg.mxu0
      %v518 = vmul.f32 %v515, %v494
      %v519 = vpack.c.bf16 %v518, %v518
      %520 = vrot.lane.b32.xlu0 %v461, 112
      %v521 = vpop.permute.xlu0 %520
      %522 = vrot.lane.b32.xlu0 %v461, 80
      %v523 = vpop.permute.xlu0 %522
      %v525 = vsel %vm464, %v521, 0
      %v528 = vsel %vm464, %v523, 0
      %530 = vmatpush.bf16.xpose.msra.mxu0 0
      %531 = vmatpush.bf16.xpose.msra.mxu0 0
      %532 = vmatpush.bf16.xpose.msra.mxu0 0
      %533 = vmatpush.bf16.xpose.msra.mxu0 0
      %534 = vmatpush.bf16.xpose.msra.mxu0 0
      %535 = vmatpush.bf16.xpose.msra.mxu0 0
      %536 = vmatpush.bf16.xpose.msra.mxu0 0
      %537 = vmatpush.bf16.xpose.msra.mxu0 %v528
      %538 = vmatmul.bf16.gmra.mxu0 %v525
      %v539 = vpop.f32.mrf.mxu0
      %v540 = vadd.f32 %v421, %v539
      %v541 = vpop.f32.mrf.mxu0
      %542 = vdwg.mxu0
      %v543 = vsel %vm484, %v540, -inf
      %544 = vmax.xlane.f32.xlu0 %v543
      %v545 = vpop.xlane.xlu0 %544
      %v546 = vsub.f32 %v540, %v545
      %v547 = vmul.f32 %v546, 1.442695
      %v548 = vpow.pop %v547
      %v549 = vsel %vm484, %v548, 0.0
      %550 = vadd.xlane.f32.xlu0 %v549
      %v551 = vpop.xlane.xlu0 %550
      %v552 = vrcp.pop %v551
      %v553 = vpack.c.bf16 %v548, %v548
      %554 = vrot.lane.b32.xlu0 %v461, 48
      %v555 = vpop.permute.xlu0 %554
      %v557 = vsel %vm484, %v553, 0
      %v560 = vsel %vm501, %v555, 0
      %562 = vmatpush.bf16.msra.mxu0 0
      %563 = vmatpush.bf16.msra.mxu0 0
      %564 = vmatpush.bf16.msra.mxu0 0
      %565 = vmatpush.bf16.msra.mxu0 0
      %566 = vmatpush.bf16.msra.mxu0 0
      %567 = vmatpush.bf16.msra.mxu0 0
      %568 = vmatpush.bf16.msra.mxu0 0
      %569 = vmatpush.bf16.msra.mxu0 %v560
      %570 = vmatmul.bf16.gmra.mxu0 %v557
      %v571 = vpop.f32.mrf.mxu0
      %v572 = vadd.f32 0.0, %v571
      %v573 = vpop.f32.mrf.mxu0
      %574 = vdwg.mxu0
      %v575 = vmul.f32 %v572, %v552
      %v576 = vpack.c.bf16 %v575, %v575
      %v578 = vunpack.c.l.b16 %v576
      %v579 = vpack.c.b16 %v578, %v578
      %580 = vrot.lane.b32.xlu0 %v579, 16
      %v581 = vpop.permute.xlu0 %580
      %v584 = vsel %vm464, %v519, %v581
      %v585 = vld [vmem:[%s391] sm:$0xf]
      %v586 = vld [vmem:[%s391 + $0x4] sm:$0xf]
      %v587 = vld [vmem:[%s391 + $0x8] sm:$0xf]
      %v588 = vld [vmem:[%s391 + $0xc] sm:$0xf]
      %v589 = vperm.slane %v422, 1
      %v594 = vunpack.c.l.b16 %v585
      %v595 = vunpack.c.l.b16 %v586
      %v596 = vunpack.c.l.b16 %v587
      %v597 = vunpack.c.l.b16 %v588
      %v598 = vpack.c.b16 %v595, %v594
      %v599 = vpack.c.b16 %v597, %v596
      %v602 = vsel %vm441, %v584, 0
      %604 = vmatpush.bf16.msra.mxu0 0
      %605 = vmatpush.bf16.msra.mxu0 0
      %606 = vmatpush.bf16.msra.mxu0 0
      %607 = vmatpush.bf16.msra.mxu0 0
      %608 = vmatpush.bf16.msra.mxu0 0
      %609 = vmatpush.bf16.msra.mxu0 0
      %610 = vmatpush.bf16.msra.mxu0 %v599
      %611 = vmatpush.bf16.msra.mxu0 %v598
      %612 = vmatmul.bf16.gmra.mxu0 %v602
      %v613 = vpop.f32.mrf.mxu0
      %v614 = vadd.f32 %v589, %v613
      %v615 = vpop.f32.mrf.mxu0
      %616 = vdwg.mxu0
      %v617 = vadd.f32 %v420, %v614
      %v618 = vsel %vm441, %v617, 0.0
      %619 = vadd.xlane.f32.xlu0 %v618
      %v620 = vpop.xlane.xlu0 %619
      %v621 = vrcp.pop 32.0
      %v622 = vmul.f32 32.0, %v621
      %v623 = vsub.f32 1.0, %v622
      %v624 = vmul.f32 %v621, %v623
      %v625 = vadd.f32 %v621, %v624
      %vm626 = vweird.f32 %v621
      %v627 = vsel %vm626, %v621, %v625
      %v628 = vmul.f32 %v620, %v627
      %v629 = vsub.f32 %v617, %v628
      %v630 = vmul.f32 %v629, %v629
      %v631 = vsel %vm441, %v630, 0.0
      %632 = vadd.xlane.f32.xlu0 %v631
      %v633 = vpop.xlane.xlu0 %632
      %v634 = vmul.f32 %v633, %v627
      %v635 = vadd.f32 %v634, 1e-05
      %v636 = vrsqrt.pop %v635
      %v637 = vmul.f32 %v636, %v635
      %v638 = vmul.f32 %v637, %v636
      %v639 = vmul.f32 0.5, %v638
      %v640 = vsub.f32 1.5, %v639
      %v641 = vmul.f32 %v636, %v640
      %vm642 = vweird.f32 %v635
      %vm643 = vweird.f32 %v636
      %vm644 = vmor %vm642, %vm643
      %v645 = vsel %vm644, %v636, %v641
      %v646 = vmul.f32 %v629, %v645
      %v647 = vperm.slane %v422, 2
      %v648 = vmul.f32 %v646, %v647
      %v649 = vperm.slane %v422, 3
      %v650 = vadd.f32 %v648, %v649
      %v651 = vpack.c.bf16 %v650, %v650
      %v652 = vld [vmem:[%s396] sm:$0xf]
      %v653 = vld [vmem:[%s396 + $0x4] sm:$0xf]
      %v654 = vld [vmem:[%s396 + $0x8] sm:$0xf]
      %v655 = vld [vmem:[%s396 + $0xc] sm:$0xf]
      %v656 = vperm.slane %v422, 4
      %v661 = vunpack.c.l.b16 %v652
      %v662 = vunpack.c.l.b16 %v653
      %v663 = vunpack.c.l.b16 %v654
      %v664 = vunpack.c.l.b16 %v655
      %v665 = vpack.c.b16 %v662, %v661
      %v666 = vpack.c.b16 %v664, %v663
      %v670 = vsel %vm441, %v651, 0
      %672 = vmatpush.bf16.msra.mxu0 0
      %673 = vmatpush.bf16.msra.mxu0 0
      %674 = vmatpush.bf16.msra.mxu0 0
      %675 = vmatpush.bf16.msra.mxu0 0
      %676 = vmatpush.bf16.msra.mxu0 0
      %677 = vmatpush.bf16.msra.mxu0 0
      %678 = vmatpush.bf16.msra.mxu0 %v666
      %679 = vmatpush.bf16.msra.mxu0 %v665
      %680 = vmatmul.bf16.gmra.mxu0 %v670
      %v681 = vpop.f32.mrf.mxu0
      %v682 = vadd.f32 %v656, %v681
      %v683 = vpop.f32.mrf.mxu0
      %684 = vdwg.mxu0
      %v685 = vmax.f32 %v682, 0.0
      %v686 = vpack.c.bf16 %v685, %v685
      %v687 = vld [vmem:[%s401] sm:$0xf]
      %v688 = vld [vmem:[%s401 + $0x4] sm:$0xf]
      %v689 = vld [vmem:[%s401 + $0x8] sm:$0xf]
      %v690 = vld [vmem:[%s401 + $0xc] sm:$0xf]
      %v691 = vld [vmem:[%s401 + $0x10] sm:$0xf]
      %v692 = vld [vmem:[%s401 + $0x14] sm:$0xf]
      %v693 = vld [vmem:[%s401 + $0x18] sm:$0xf]
      %v694 = vld [vmem:[%s401 + $0x1c] sm:$0xf]
      %v695 = vperm.slane %v422, 5
      %v704 = vunpack.c.l.b16 %v687
      %v705 = vunpack.c.l.b16 %v688
      %v706 = vunpack.c.l.b16 %v689
      %v707 = vunpack.c.l.b16 %v690
      %v708 = vunpack.c.l.b16 %v691
      %v709 = vunpack.c.l.b16 %v692
      %v710 = vunpack.c.l.b16 %v693
      %v711 = vunpack.c.l.b16 %v694
      %v712 = vpack.c.b16 %v705, %v704
      %v713 = vpack.c.b16 %v707, %v706
      %v714 = vpack.c.b16 %v709, %v708
      %v715 = vpack.c.b16 %v711, %v710
      %vm720 = vcmask 523264
      %v722 = vsel %vm720, %v686, 0
      %724 = vmatpush.bf16.msra.mxu0 0
      %725 = vmatpush.bf16.msra.mxu0 0
      %726 = vmatpush.bf16.msra.mxu0 0
      %727 = vmatpush.bf16.msra.mxu0 0
      %728 = vmatpush.bf16.msra.mxu0 %v715
      %729 = vmatpush.bf16.msra.mxu0 %v714
      %730 = vmatpush.bf16.msra.mxu0 %v713
      %731 = vmatpush.bf16.msra.mxu0 %v712
      %732 = vmatmul.bf16.gmra.mxu0 %v722
      %v733 = vpop.f32.mrf.mxu0
      %v734 = vadd.f32 %v695, %v733
      %v735 = vpop.f32.mrf.mxu0
      %736 = vdwg.mxu0
      %v737 = vadd.f32 %v650, %v734
      %v738 = vsel %vm441, %v737, 0.0
      %739 = vadd.xlane.f32.xlu0 %v738
      %v740 = vpop.xlane.xlu0 %739
      %v741 = vmul.f32 %v740, %v627
      %v742 = vsub.f32 %v737, %v741
      %v743 = vmul.f32 %v742, %v742
      %v744 = vsel %vm441, %v743, 0.0
      %745 = vadd.xlane.f32.xlu0 %v744
      %v746 = vpop.xlane.xlu0 %745
      %v747 = vmul.f32 %v746, %v627
      %v748 = vadd.f32 %v747, 1e-05
      %v749 = vrsqrt.pop %v748
      %v750 = vmul.f32 %v749, %v748
      %v751 = vmul.f32 %v750, %v749
      %v752 = vmul.f32 0.5, %v751
      %v753 = vsub.f32 1.5, %v752
      %v754 = vmul.f32 %v749, %v753
      %vm755 = vweird.f32 %v748
      %vm756 = vweird.f32 %v749
      %vm757 = vmor %vm755, %vm756
      %v758 = vsel %vm757, %v749, %v754
      %v759 = vmul.f32 %v742, %v758
      %v760 = vperm.slane %v422, 6
      %v761 = vmul.f32 %v759, %v760
      %v762 = vperm.slane %v422, 7
      %v763 = vadd.f32 %v761, %v762
      %764 = vst.msk [vmem:[#allocation2] sm:$0xff] %vm441, %v763
      %p765 = scmp.eq.s32.totalorder %s24, 1
      // Predicated region
      $region57: #{transformer_forward.2} parent=51 // pred_check
        %p766 = pneg %p765
      $region58: #{transformer_forward.2} parent=51 // pred_check_branch
        %768 = sbr.rel (%p766) target = $region60
      $region59: #{transformer_forward.2} parent=51 // pred_region
        %v769 = vpack.c.bf16 %v763, %v763
        %vm770 = vcmask 257024
        %771 = vst.msk [vmem:[%s409] sm:$0xf] %vm770, %v769
      $region60: #{transformer_forward.2} parent=51 // pred_fallthru
        _
      %p772 = scmp.lt.s32.totalorder %s23, 1
      %s773 = scalar_select %p772, %s23, 1
      %s774 = smul.addr %s773, 4
      %s775 = scalar_lea.vmem %s8, %s774
      // Predicated region
      $region61: #{transformer_forward.2} parent=51 // pred_check
        %p776 = pneg %p247
      $region62: #{transformer_forward.2} parent=51 // pred_check_branch
        %778 = sbr.rel (%p776) target = $region64
      $region63: #{transformer_forward.2} parent=51 // pred_region
        _
      $region64: #{transformer_forward.2} parent=51 // pred_fallthru
        _
    $region52: #{transformer_forward.2} parent=5 // pred_fallthru
      _
    %p779 = scmp.le.s32.totalorder 2, %s14
    // Predicated region
    $region65: #{transformer_forward.2} parent=5 // pred_check
      %p780 = pneg %p779
    $region66: #{transformer_forward.2} parent=5 // pred_check_branch
      %782 = sbr.rel (%p780) target = $region68
    $region67: #{transformer_forward.2} parent=5 // pred_region
      %s783 = ssub.s32 %s14, 2
      // Predicated region
      $region69: #{transformer_forward.2} parent=67 // pred_check
        %p784 = pneg %p253
      $region70: #{transformer_forward.2} parent=67 // pred_check_branch
        %786 = sbr.rel (%p784) target = $region72
      $region71: #{transformer_forward.2} parent=67 // pred_region
        %p787 = scmp.lt.s32.totalorder %s25, 1
        %s788 = scalar_select %p787, %s25, 1
        %s789 = smul.addr %s788, 4
        %s790 = scalar_lea.vmem %s8, %s789
      $region72: #{transformer_forward.2} parent=67 // pred_fallthru
        _
    $region68: #{transformer_forward.2} parent=5 // pred_fallthru
      _
  $region6: #{transformer_forward.2} parent=0 // loop_footer
    %s18 = sadd.s32 1, %s14
  $region7: #{transformer_forward.2} parent=0 // loop_footer_branch
    %13 = sbr.rel target = $region3
  $region8: #{transformer_forward.2} parent=0 // loop_exit
    _

</llo_original>
